<compile_context>
chip_gen: v5e
topology: v5e:2x2
jax: 0.10.0
libtpu: 0.0.40
codegen_flags: <defaults>
</compile_context>

<pallas_src>
import functools
import math

import jax
import jax.numpy as jnp
from jax import lax
from jax.experimental import pallas as pl
from jax.experimental.pallas import tpu as pltpu


DEFAULT_MASK_VALUE = -1e30
VMEM_LIMIT = 48 * 1024 * 1024  # explicit scoped-VMEM cap (fits v7x 64 MiB physical)


def _pick_tile(dim, target, align=128):
    """Largest tile <= target that divides dim and is a multiple of `align`,
    falling back to the full extent (always Mosaic-legal)."""
    if dim <= target:
        return dim
    t = (target // align) * align
    while t >= align:
        if dim % t == 0:
            return t
        t -= align
    return dim


# ---------------------------------------------------------------------------
# Kernel 1: tiled matmul  y = a @ b   (LoRA already merged into b at load time)
# ---------------------------------------------------------------------------
def _matmul_kernel(a_ref, b_ref, o_ref, acc_ref):
    @pl.when(pl.program_id(2) == 0)
    def _init():
        acc_ref[...] = jnp.zeros_like(acc_ref)

    acc_ref[...] += jnp.dot(a_ref[...], b_ref[...],
                            preferred_element_type=jnp.float32)

    @pl.when(pl.program_id(2) == pl.num_programs(2) - 1)
    def _store():
        o_ref[...] = acc_ref[...].astype(o_ref.dtype)


def matmul(a, b, *, tm=512, tn=512, tk=1024, out_dtype=None):
    """a: (M, K), b: (K, N) -> (M, N), f32 accumulation."""
    M, K = a.shape
    K2, N = b.shape
    assert K == K2
    out_dtype = out_dtype or a.dtype
    tm = _pick_tile(M, tm)
    tn = _pick_tile(N, tn)
    tk = _pick_tile(K, tk)
    grid = (M // tm, N // tn, K // tk)
    return pl.pallas_call(
        _matmul_kernel,
        out_shape=jax.ShapeDtypeStruct((M, N), out_dtype),
        grid=grid,
        in_specs=[pl.BlockSpec((tm, tk), lambda i, j, k: (i, k)),
                  pl.BlockSpec((tk, tn), lambda i, j, k: (k, j))],
        out_specs=pl.BlockSpec((tm, tn), lambda i, j, k: (i, j)),
        scratch_shapes=[pltpu.VMEM((tm, tn), jnp.float32)],
        compiler_params=pltpu.CompilerParams(
            dimension_semantics=("parallel", "parallel", "arbitrary"),
            vmem_limit_bytes=VMEM_LIMIT),
    )(a, b)


# ---------------------------------------------------------------------------
# Kernel 2: flash attention (online softmax, in-kernel causal mask,
#           causally-clamped K/V DMA, lane-dense m/l scratch)
# ---------------------------------------------------------------------------
def _flash_attn_kernel(tq, tk, causal, q_ref, k_ref, v_ref, o_ref,
                       m_sc, l_sc, acc_sc):
    qi = pl.program_id(1)
    ki = pl.program_id(2)

    @pl.when(ki == 0)
    def _init():
        m_sc[...] = jnp.full_like(m_sc, -jnp.inf)
        l_sc[...] = jnp.zeros_like(l_sc)
        acc_sc[...] = jnp.zeros_like(acc_sc)

    def _update(apply_mask):
        q = q_ref[...]                      # (tq, D), 1/sqrt(D) folded into wq
        k = k_ref[...]                      # (tk, D)
        # s = q @ k^T via dot_general contracting dims -- no materialized transpose.
        s = lax.dot_general(q, k, (((1,), (1,)), ((), ())),
                            preferred_element_type=jnp.float32)     # (tq, tk) f32
        if apply_mask:
            row = qi * tq + lax.broadcasted_iota(jnp.int32, (tq, tk), 0)
            col = ki * tk + lax.broadcasted_iota(jnp.int32, (tq, tk), 1)
            s = jnp.where(row >= col, s, DEFAULT_MASK_VALUE)
        m_prev = m_sc[...]                                           # (tq, 128)
        l_prev = l_sc[...]                                           # (tq, 128)
        m_cur = jnp.max(s, axis=-1, keepdims=True)                   # (tq, 1)
        m_next = jnp.maximum(m_prev, m_cur)                          # (tq, 128)
        alpha = jnp.exp(m_prev - m_next)                             # (tq, 128)
        p = jnp.exp(s - m_next[:, 0:1])                              # (tq, tk)
        l_sc[...] = alpha * l_prev + jnp.sum(p, axis=-1, keepdims=True)
        acc_sc[...] = alpha[:, 0:1] * acc_sc[...] + jnp.dot(
            p.astype(v_ref.dtype), v_ref[...], preferred_element_type=jnp.float32)
        m_sc[...] = m_next

    if causal:
        # fully-masked KV blocks: skip compute (their DMA is already clamped away).
        needs_compute = ki * tk <= qi * tq + (tq - 1)
        # only diagonal blocks contain masked entries -> need the iota/compare/select.
        needs_mask = ki * tk + (tk - 1) > qi * tq
        pl.when(jnp.logical_and(needs_compute, needs_mask))(
            functools.partial(_update, True))
        pl.when(jnp.logical_and(needs_compute, jnp.logical_not(needs_mask)))(
            functools.partial(_update, False))
    else:
        _update(False)

    @pl.when(ki == pl.num_programs(2) - 1)
    def _finalize():
        inv_l = pl.reciprocal(l_sc[...], approx=True)                # EUP slot
        o_ref[...] = (acc_sc[...] * inv_l[:, 0:1]).astype(o_ref.dtype)


def flash_attention(q, k, v, *, causal=True, tq=512, tk=256):
    """q, k, v: (B*H, S, D); 1/sqrt(D) already folded into the q projection."""
    BH, S, D = q.shape
    tq = _pick_tile(S, tq)
    tk = _pick_tile(S, tk)
    grid = (BH, S // tq, S // tk)

    q_index = lambda b, i, j: (b, i, 0)
    if causal:
        # Clamp the kv block index to the last block overlapping the causal region of
        # q-tile i: unchanged block index between steps => Pallas skips the DMA.
        kv_index = lambda b, i, j: (b, jnp.minimum(j, ((i + 1) * tq - 1) // tk), 0)
    else:
        kv_index = lambda b, i, j: (b, j, 0)

    q_spec = pl.BlockSpec((None, tq, D), q_index)
    kv_spec = pl.BlockSpec((None, tk, D), kv_index)
    return pl.pallas_call(
        functools.partial(_flash_attn_kernel, tq, tk, causal),
        out_shape=jax.ShapeDtypeStruct((BH, S, D), q.dtype),
        grid=grid,
        in_specs=[q_spec, kv_spec, kv_spec],
        out_specs=pl.BlockSpec((None, tq, D), q_index),
        scratch_shapes=[pltpu.VMEM((tq, 128), jnp.float32),   # m (lane-replicated)
                        pltpu.VMEM((tq, 128), jnp.float32),   # l (lane-replicated)
                        pltpu.VMEM((tq, D), jnp.float32)],    # acc
        compiler_params=pltpu.CompilerParams(
            dimension_semantics=("parallel", "parallel", "arbitrary"),
            vmem_limit_bytes=VMEM_LIMIT),
    )(q, k, v)


# ---------------------------------------------------------------------------
# RoPE helpers
# ---------------------------------------------------------------------------
def apply_rope_interleaved(x, cos, sin):
    """Reference semantics: interleaved even/odd pairs == torch.view_as_complex."""
    xf = x.astype(jnp.float32)
    xr = xf[..., 0::2]
    xi = xf[..., 1::2]
    c = cos[None, :, None, :]
    s = sin[None, :, None, :]
    out = jnp.stack([xr * c - xi * s, xr * s + xi * c], axis=-1).reshape(x.shape)
    return out.astype(x.dtype)


def apply_rope_halfsplit(x, cos, sin):
    """RoPE on the per-head half-split layout (wq/wk columns pre-permuted at load time).
    Equals a fixed permutation of the interleaved RoPE; q.k^T scores are unchanged."""
    xf = x.astype(jnp.float32)
    half = x.shape[-1] // 2
    x1 = xf[..., :half]
    x2 = xf[..., half:]
    c = cos[None, :, None, :]
    s = sin[None, :, None, :]
    out = jnp.concatenate([x1 * c - x2 * s, x1 * s + x2 * c], axis=-1)
    return out.astype(x.dtype)


# ---------------------------------------------------------------------------
# One-time weight preparation (hoisted out of the per-call forward):
#   * LoRA merged into the base weights (inference): W_eff = W + scale * up @ dn
#   * pre-transposed to (in, out), q/k/v concatenated for a fused QKV matmul
#   * per-head even/odd -> half-split column permutation of wq/wk (for cheap RoPE)
#   * 1/sqrt(head_dim) folded into wq (in f32, before the compute-dtype cast)
# ---------------------------------------------------------------------------
def prepare_attention_weights(params, n_heads, lora_scale, *, compute_dtype=jnp.bfloat16):
    H = n_heads
    HD, dim = params["wq"].shape
    D = HD // H

    def merged(w, dn, up):
        return (w + lora_scale * (up @ dn)).T          # (in, out), f32

    def halfsplit_cols(w):                              # interleaved -> [evens | odds] per head
        inp = w.shape[0]
        return w.reshape(inp, H, D // 2, 2).transpose(0, 1, 3, 2).reshape(inp, H * D)

    wq = halfsplit_cols(merged(params["wq"], params["q_dn"], params["q_up"]))
    wq = wq * (1.0 / math.sqrt(D))                      # fold softmax scale into wq
    wk = halfsplit_cols(merged(params["wk"], params["k_dn"], params["k_up"]))
    wv = merged(params["wv"], params["v_dn"], params["v_up"])
    w_qkv = jnp.concatenate([wq, wk, wv], axis=1).astype(compute_dtype)   # (dim, 3*H*D)
    w_o = merged(params["wo"], params["o_dn"], params["o_up"]).astype(compute_dtype)
    return {"w_qkv": w_qkv, "w_o": w_o}


# ---------------------------------------------------------------------------
# Full forward (Attention.forward with LoRA on q/k/v/o, kv_cache=False,
# rotary embeddings, causal mask)
# ---------------------------------------------------------------------------
def attention_forward(x, weights, freqs_cos, freqs_sin, n_heads, *, causal=True):
    B, S, dim = x.shape
    H = n_heads
    w_qkv = weights["w_qkv"]
    w_o = weights["w_o"]
    cdt = w_qkv.dtype
    D = w_qkv.shape[1] // (3 * H)

    # Fused QKV projection: one tiled matmul, x read from HBM once.
    x2d = x.reshape(B * S, dim).astype(cdt)
    qkv = matmul(x2d, w_qkv, out_dtype=cdt)                       # (B*S, 3*H*D)
    xq, xk, xv = jnp.split(qkv, 3, axis=1)

    xq = apply_rope_halfsplit(xq.reshape(B, S, H, D), freqs_cos, freqs_sin)
    xk = apply_rope_halfsplit(xk.reshape(B, S, H, D), freqs_cos, freqs_sin)
    xv = xv.reshape(B, S, H, D)

    def to_bh(t):  # (B, S, H, D) -> (B*H, S, D)
        return jnp.transpose(t, (0, 2, 1, 3)).reshape(B * H, S, D)

    q = to_bh(xq).astype(cdt)
    k = to_bh(xk).astype(cdt)
    v = to_bh(xv).astype(cdt)

    out = flash_attention(q, k, v, causal=causal)                 # (B*H, S, D)
    out = jnp.transpose(out.reshape(B, H, S, D), (0, 2, 1, 3)).reshape(B * S, H * D)

    y = matmul(out.astype(cdt), w_o, out_dtype=cdt)               # output projection (+LoRA)
    return y.astype(x.dtype).reshape(B, S, dim)


# ---------------------------------------------------------------------------
# Pure-JAX fp32 reference (un-merged LoRA, interleaved RoPE, explicit softmax)
# ---------------------------------------------------------------------------
def reference_forward(x, params, freqs_cos, freqs_sin, n_heads, lora_scale, *, causal=True):
    B, S, dim = x.shape
    H = n_heads
    D = dim // H

    def lin_lora(x2, w, dn, up):
        return x2 @ w.T + ((x2 @ dn.T) @ up.T) * lora_scale

    x2d = x.reshape(B * S, dim)
    xq = lin_lora(x2d, params["wq"], params["q_dn"], params["q_up"]).reshape(B, S, H, D)
    xk = lin_lora(x2d, params["wk"], params["k_dn"], params["k_up"]).reshape(B, S, H, D)
    xv = lin_lora(x2d, params["wv"], params["v_dn"], params["v_up"]).reshape(B, S, H, D)
    xq = apply_rope_interleaved(xq, freqs_cos, freqs_sin)
    xk = apply_rope_interleaved(xk, freqs_cos, freqs_sin)
    q = jnp.transpose(xq, (0, 2, 1, 3))
    k = jnp.transpose(xk, (0, 2, 1, 3))
    v = jnp.transpose(xv, (0, 2, 1, 3))
    scores = jnp.einsum("bhqd,bhkd->bhqk", q, k) / math.sqrt(D)
    if causal:
        row = jnp.arange(S)[:, None]
        col = jnp.arange(S)[None, :]
        scores = jnp.where(row >= col, scores, DEFAULT_MASK_VALUE)
    p = jax.nn.softmax(scores.astype(jnp.float32), axis=-1).astype(q.dtype)
    out = jnp.einsum("bhqk,bhkd->bhqd", p, v)
    out = jnp.transpose(out, (0, 2, 1, 3)).reshape(B * S, H * D)
    y = lin_lora(out, params["wo"], params["o_dn"], params["o_up"])
    return y.reshape(B, S, dim)


if __name__ == "__main__":
    # ModelArgs-equivalent config (small synthetic sizes)
    B, S, dim, n_heads = 2, 8, 32, 4
    head_dim = dim // n_heads
    lora_r, lora_alpha = 4, 8
    lora_scale = 1.0 * lora_alpha / lora_r

    key = jax.random.PRNGKey(0)
    keys = jax.random.split(key, 16)

    def kuni(k, shape, fan_in):
        bound = 1.0 / math.sqrt(fan_in)
        return jax.random.uniform(k, shape, jnp.float32, -bound, bound)

    params = {
        "wq": kuni(keys[0], (n_heads * head_dim, dim), dim),
        "wk": kuni(keys[1], (n_heads * head_dim, dim), dim),
        "wv": kuni(keys[2], (n_heads * head_dim, dim), dim),
        "wo": kuni(keys[3], (dim, n_heads * head_dim), n_heads * head_dim),
        # LoRA down: kaiming-uniform-like; LoRA up: PyTorch inits to zero, here small
        # non-zero values so the merged-LoRA path is actually exercised.
        "q_dn": kuni(keys[4], (lora_r, dim), dim),
        "q_up": 0.01 * kuni(keys[5], (n_heads * head_dim, lora_r), lora_r),
        "k_dn": kuni(keys[6], (lora_r, dim), dim),
        "k_up": 0.01 * kuni(keys[7], (n_heads * head_dim, lora_r), lora_r),
        "v_dn": kuni(keys[8], (lora_r, dim), dim),
        "v_up": 0.01 * kuni(keys[9], (n_heads * head_dim, lora_r), lora_r),
        "o_dn": kuni(keys[10], (lora_r, n_heads * head_dim), n_heads * head_dim),
        "o_up": 0.01 * kuni(keys[11], (dim, lora_r), lora_r),
    }

    x = jax.random.normal(keys[12], (B, S, dim), jnp.float32)

    # precompute_freqs_cis equivalent (theta = 10000), as cos/sin tables
    inv_freq = 1.0 / (10000.0 ** (jnp.arange(0, head_dim, 2, dtype=jnp.float32) / head_dim))
    t = jnp.arange(S, dtype=jnp.float32)
    angles = jnp.outer(t, inv_freq)          # (S, head_dim // 2)
    freqs_cos = jnp.cos(angles)
    freqs_sin = jnp.sin(angles)

    y_ref = reference_forward(x, params, freqs_cos, freqs_sin, n_heads, lora_scale)

    # fp32 compute path (differences: merged LoRA, folded scale, half-split RoPE,
    # approx reciprocal)
    w32 = prepare_attention_weights(params, n_heads, lora_scale, compute_dtype=jnp.float32)
    y32 = attention_forward(x, w32, freqs_cos, freqs_sin, n_heads)
    y32 = jax.block_until_ready(y32)
    assert y32.shape == (B, S, dim)
    assert jnp.allclose(y32, y_ref, atol=2e-2, rtol=2e-2), \
        "Pallas (fp32 compute) output mismatch vs JAX reference"

    # bf16 MXU path (production configuration; looser tolerance for bf16 rounding)
    w16 = prepare_attention_weights(params, n_heads, lora_scale, compute_dtype=jnp.bfloat16)
    y16 = attention_forward(x, w16, freqs_cos, freqs_sin, n_heads)
    y16 = jax.block_until_ready(y16)
    assert y16.shape == (B, S, dim)
    assert jnp.allclose(y16.astype(jnp.float32), y_ref, atol=8e-2, rtol=8e-2), \
        "Pallas (bf16 compute) output mismatch vs JAX reference"

    print("KERNEL_OK")
</pallas_src>

<mosaic_0001>
module attributes {stable_mosaic.version = 11 : i64} {
  func.func @_matmul_kernel(%arg0: i32, %arg1: i32, %arg2: i32, %arg3: memref<16x32xf32, #tpu.memory_space<vmem>>, %arg4: memref<32x96xf32, #tpu.memory_space<vmem>>, %arg5: memref<16x96xf32, #tpu.memory_space<vmem>>, %arg6: memref<16x96xf32, #tpu.memory_space<vmem>>) attributes {dimension_semantics = [#tpu.dimension_semantics<parallel>, #tpu.dimension_semantics<parallel>, #tpu.dimension_semantics<arbitrary>], iteration_bounds = array<i64: 1, 1, 1>, scalar_prefetch = 0 : i64, scratch_operands = 1 : i64, tpu.core_type = #tpu.core_type<tc>, window_params = [{transform_indices = @transform_0, window_bounds = array<i64: 16, 32>}, {transform_indices = @transform_1, window_bounds = array<i64: 32, 96>}, {transform_indices = @transform_2, window_bounds = array<i64: 16, 96>}]} {
    %c0_i32 = arith.constant 0 : i32
    %0 = arith.cmpi eq, %arg2, %c0_i32 : i32
    %1 = arith.extui %0 : i1 to i32
    %c0_i32_0 = arith.constant 0 : i32
    %2 = arith.cmpi ne, %1, %c0_i32_0 : i32
    scf.if %2 {
      %cst_10 = arith.constant 0.000000e+00 : f32
      %12 = vector.broadcast %cst_10 : f32 to vector<16x96xf32>
      %c0_11 = arith.constant 0 : index
      %c0_12 = arith.constant 0 : index
      %13 = vector.load %arg6[%c0_11, %c0_12] : memref<16x96xf32, #tpu.memory_space<vmem>>, vector<16x96xf32>
      tpu.vector_store %arg6[%c0_11, %c0_12], %12 {strides = array<i32>} : memref<16x96xf32, #tpu.memory_space<vmem>>, vector<16x96xf32>,
    } else {
    }
    %c0 = arith.constant 0 : index
    %c0_1 = arith.constant 0 : index
    %3 = vector.load %arg6[%c0, %c0_1] : memref<16x96xf32, #tpu.memory_space<vmem>>, vector<16x96xf32>
    %c0_2 = arith.constant 0 : index
    %c0_3 = arith.constant 0 : index
    %4 = vector.load %arg3[%c0_2, %c0_3] : memref<16x32xf32, #tpu.memory_space<vmem>>, vector<16x32xf32>
    %c0_4 = arith.constant 0 : index
    %c0_5 = arith.constant 0 : index
    %5 = vector.load %arg4[%c0_4, %c0_5] : memref<32x96xf32, #tpu.memory_space<vmem>>, vector<32x96xf32>
    %cst = arith.constant dense<0.000000e+00> : vector<16x96xf32>
    %6 = tpu.matmul %4, %5, %cst {dimension_numbers = #tpu.dot_dimension_numbers<[1], [0], [0], [1], [0, 0, 1, 1], [], []>} : vector<16x32xf32>, vector<32x96xf32>, vector<16x96xf32> -> vector<16x96xf32>
    %7 = arith.addf %3, %6 : vector<16x96xf32>
    %c0_6 = arith.constant 0 : index
    %c0_7 = arith.constant 0 : index
    %8 = vector.load %arg6[%c0_6, %c0_7] : memref<16x96xf32, #tpu.memory_space<vmem>>, vector<16x96xf32>
    tpu.vector_store %arg6[%c0_6, %c0_7], %7 {strides = array<i32>} : memref<16x96xf32, #tpu.memory_space<vmem>>, vector<16x96xf32>,
    %c0_i32_8 = arith.constant 0 : i32
    %9 = arith.cmpi eq, %arg2, %c0_i32_8 : i32
    %10 = arith.extui %9 : i1 to i32
    %c0_i32_9 = arith.constant 0 : i32
    %11 = arith.cmpi ne, %10, %c0_i32_9 : i32
    scf.if %11 {
      %c0_10 = arith.constant 0 : index
      %c0_11 = arith.constant 0 : index
      %12 = vector.load %arg6[%c0_10, %c0_11] : memref<16x96xf32, #tpu.memory_space<vmem>>, vector<16x96xf32>
      %c0_12 = arith.constant 0 : index
      %c0_13 = arith.constant 0 : index
      %13 = vector.load %arg5[%c0_12, %c0_13] : memref<16x96xf32, #tpu.memory_space<vmem>>, vector<16x96xf32>
      tpu.vector_store %arg5[%c0_12, %c0_13], %12 {strides = array<i32>} : memref<16x96xf32, #tpu.memory_space<vmem>>, vector<16x96xf32>,
    } else {
    }
    return
  }
  func.func @transform_0(%arg0: i32, %arg1: i32, %arg2: i32) -> (i32, i32) {
    %c0_i32 = arith.constant 0 : i32
    return %arg0, %arg2 : i32, i32
  }
  func.func @transform_1(%arg0: i32, %arg1: i32, %arg2: i32) -> (i32, i32) {
    %c0_i32 = arith.constant 0 : i32
    return %arg2, %arg1 : i32, i32
  }
  func.func @transform_2(%arg0: i32, %arg1: i32, %arg2: i32) -> (i32, i32) {
    %c0_i32 = arith.constant 0 : i32
    return %arg0, %arg1 : i32, i32
  }
}

</mosaic_0001>

<llo_original>
// kernel: tpu_custom_call.1
$region0: #{tpu_custom_call.1}
  #allocation0 [shape = 'u32[]', space=smem, size = 0x4, offset = 0x4, fixed_abs, tag = 'smem constant byte address 0x4 - core index']
  #allocation1 [shape = 'u32[72,128]{1,0:T(1,128)}', space=vmem, size = 0x9000, scoped, tag = 'internal scratch']
  #allocation2 [shape = 'f32[16,96]{1,0:T(8,128)}', space=vmem, size = 0x2000, scoped, tag = 'scratch operand']
  %s0 = inlined_call_operand.hbm [shape: f32[16,32], index: 0, kind: input, shape index: {}]
  %s1 = inlined_call_operand.hbm [shape: f32[32,96], index: 1, kind: input, shape index: {}]
  %s2 = inlined_call_operand.hbm [shape: f32[16,96], index: 2, kind: output, shape index: {}]
  %s3 = sld [smem:[#allocation0]]
  $region34: #{tpu_custom_call.1} parent=0
    _
  %s5 = ssub.s32 1, %s3
  %s6 = scalar_select 0, %s5, %s3
  $region1: #{tpu_custom_call.1} parent=0
    #allocation3 [shape = 'u8[8192]{0}', space=vmem, size = 0x2000, scoped, tag = 'input window, operand 0, single buffered']
    #allocation4 [shape = 's32[1]{0}', space=sflag, size = 0x4, scoped, tag = 'scoped memory for tpu_custom_call.1']
    #allocation5 [shape = 's32[1]{0}', space=sflag, size = 0x4, scoped, tag = 'scoped memory for tpu_custom_call.1']
    #allocation6 [shape = 'u8[16384]{0}', space=vmem, size = 0x4000, scoped, tag = 'input window, operand 1, single buffered']
    #allocation7 [shape = 's32[1]{0}', space=sflag, size = 0x4, scoped, tag = 'scoped memory for tpu_custom_call.1']
    #allocation8 [shape = 'u8[8192]{0}', space=vmem, size = 0x2000, scoped, tag = 'output window, operand 0, single buffered']
    %7 = vsyncpa [#allocation4], 0
    %8 = vsyncpa [#allocation7], 0
    %9 = vsyncpa [#allocation5], 0
    // Predicated region
    $region2: #{tpu_custom_call.1} parent=1 // pred_check
      _
    $region3: #{tpu_custom_call.1} parent=1 // pred_check_branch
      %11 = sbr.rel (0) target = $region5
    $region4: #{tpu_custom_call.1} parent=1 // pred_region
      %13 = vsyncadd [#allocation4], 0
      %s14 = sshll.u32 %s0, 4
      %s15 = int_to_ptr.hbm [resolvable:$true] %s14
      %s16 = sshll.u32 [#allocation3], 4
      %s17 = int_to_ptr.vmem [resolvable:$true] %s16
      %22 = dma.hbm_to_vmem [thread:$0]  %s15, 256, %s17, [#allocation4], 128, 128, 8
    $region5: #{tpu_custom_call.1} parent=1 // pred_fallthru
      _
    // Predicated region
    $region6: #{tpu_custom_call.1} parent=1 // pred_check
      _
    $region7: #{tpu_custom_call.1} parent=1 // pred_check_branch
      %24 = sbr.rel (0) target = $region9
    $region8: #{tpu_custom_call.1} parent=1 // pred_region
      %26 = vsyncadd [#allocation7], 0
      %s27 = sshll.u32 %s1, 4
      %s28 = int_to_ptr.hbm [resolvable:$true] %s27
      %s29 = sshll.u32 [#allocation6], 4
      %s30 = int_to_ptr.vmem [resolvable:$true] %s29
      %35 = dma.hbm_to_vmem [thread:$0]  %s28, 512, %s30, [#allocation7], 128, 128, 8
    $region9: #{tpu_custom_call.1} parent=1 // pred_fallthru
      _
    // Predicated region
    $region10: #{tpu_custom_call.1} parent=1 // pred_check
      _
    $region11: #{tpu_custom_call.1} parent=1 // pred_check_branch
      %37 = sbr.rel (0) target = $region13
    $region12: #{tpu_custom_call.1} parent=1 // pred_region
      %39 = dma.done [#allocation4], 256
    $region13: #{tpu_custom_call.1} parent=1 // pred_fallthru
      _
    // Predicated region
    $region14: #{tpu_custom_call.1} parent=1 // pred_check
      _
    $region15: #{tpu_custom_call.1} parent=1 // pred_check_branch
      %41 = sbr.rel (0) target = $region17
    $region16: #{tpu_custom_call.1} parent=1 // pred_region
      %43 = dma.done [#allocation7], 512
    $region17: #{tpu_custom_call.1} parent=1 // pred_fallthru
      _
    %p44 = scmp.eq.s32.totalorder 0, 0
    // Predicated region
    $region18: #{tpu_custom_call.1} parent=1 // pred_check
      %p45 = pneg %p44
    $region19: #{tpu_custom_call.1} parent=1 // pred_check_branch
      %47 = sbr.rel (%p45) target = $region21
    $region20: #{tpu_custom_call.1} parent=1 // pred_region
      %vm48 = vcmask 785408
      %49 = vst.msk [vmem:[#allocation2] sm:$0xff] %vm48, 0.0
      %50 = vst.msk [vmem:[#allocation2 + $0x8] sm:$0xff] %vm48, 0.0
    $region21: #{tpu_custom_call.1} parent=1 // pred_fallthru
      _
    %v51 = vld [vmem:[#allocation2] sm:$0xff]
    %v52 = vld [vmem:[#allocation2 + $0x8] sm:$0xff]
    %v53 = vld [vmem:[#allocation3] sm:$0xff]
    %v54 = vld [vmem:[#allocation3 + $0x8] sm:$0xff]
    %v55 = vld [vmem:[#allocation6] sm:$0xff]
    %v56 = vld [vmem:[#allocation6 + $0x8] sm:$0xff]
    %v57 = vld [vmem:[#allocation6 + $0x10] sm:$0xff]
    %v58 = vld [vmem:[#allocation6 + $0x18] sm:$0xff]
    %vm59 = vcmask 261120
    %v61 = vsel %vm59, %v53, 0
    %v64 = vsel %vm59, %v54, 0
    %66 = vmatpush.msra.mxu0 0.0
    %67 = vmatpush.msra.mxu0 0.0
    %68 = vmatpush.msra.mxu0 0.0
    %69 = vmatpush.msra.mxu0 0.0
    %70 = vmatpush.msra.mxu0 0.0
    %71 = vmatpush.msra.mxu0 0.0
    %72 = vmatpush.msra.mxu0 0.0
    %73 = vmatpush.msra.mxu0 0.0
    %74 = vmatpush.msra.mxu0 0.0
    %75 = vmatpush.msra.mxu0 0.0
    %76 = vmatpush.msra.mxu0 0.0
    %77 = vmatpush.msra.mxu0 0.0
    %78 = vmatpush.msra.mxu0 %v58
    %79 = vmatpush.msra.mxu0 %v57
    %80 = vmatpush.msra.mxu0 %v56
    %81 = vmatpush.msra.mxu0 %v55
    %82 = vmatmul.f32.gmra.mxu0 %v61
    %v83 = vpop.f32.mrf.mxu0
    %v84 = vadd.f32 0.0, %v83
    %85 = vmatmul.f32.gmra.mxu0 %v64
    %v86 = vpop.f32.mrf.mxu0
    %v87 = vadd.f32 0.0, %v86
    %88 = vdwg.mxu0
    %v89 = vadd.f32 %v51, %v84
    %v90 = vadd.f32 %v52, %v87
    %vm91 = vcmask 785408
    %92 = vst.msk [vmem:[#allocation2] sm:$0xff] %vm91, %v89
    %93 = vst.msk [vmem:[#allocation2 + $0x8] sm:$0xff] %vm91, %v90
    // Predicated region
    $region22: #{tpu_custom_call.1} parent=1 // pred_check
      %p94 = pneg %p44
    $region23: #{tpu_custom_call.1} parent=1 // pred_check_branch
      %96 = sbr.rel (%p94) target = $region25
    $region24: #{tpu_custom_call.1} parent=1 // pred_region
      %v97 = vld [vmem:[#allocation2] sm:$0xff]
      %v98 = vld [vmem:[#allocation2 + $0x8] sm:$0xff]
      %99 = vst.msk [vmem:[#allocation8] sm:$0xff] %vm91, %v97
      %100 = vst.msk [vmem:[#allocation8 + $0x8] sm:$0xff] %vm91, %v98
    $region25: #{tpu_custom_call.1} parent=1 // pred_fallthru
      _
    // Predicated region
    $region26: #{tpu_custom_call.1} parent=1 // pred_check
      _
    $region27: #{tpu_custom_call.1} parent=1 // pred_check_branch
      %102 = sbr.rel (0) target = $region29
    $region28: #{tpu_custom_call.1} parent=1 // pred_region
      %104 = vsyncadd [#allocation5], 0
      %s105 = sshll.u32 [#allocation8], 4
      %s106 = int_to_ptr.vmem [resolvable:$true] %s105
      %s107 = sshll.u32 %s2, 4
      %s108 = int_to_ptr.hbm [resolvable:$true] %s107
      %113 = dma.vmem_to_hbm [thread:$0]  %s106, 256, %s108, [#allocation5], 128, 128, 8
    $region29: #{tpu_custom_call.1} parent=1 // pred_fallthru
      _
    // Predicated region
    $region30: #{tpu_custom_call.1} parent=1 // pred_check
      _
    $region31: #{tpu_custom_call.1} parent=1 // pred_check_branch
      %115 = sbr.rel (0) target = $region33
    $region32: #{tpu_custom_call.1} parent=1 // pred_region
      %117 = dma.done [#allocation5], 256
    $region33: #{tpu_custom_call.1} parent=1 // pred_fallthru
      _
    %118 = vsyncpa [#allocation4], 1
    %119 = vsyncpa [#allocation7], 1
    %120 = vsyncpa [#allocation5], 1

</llo_original>
